<compile_context>
chip_gen: v5e
topology: v5e:2x2
jax: 0.10.0
libtpu: 0.0.40
codegen_flags: <defaults>
</compile_context>

<pallas_src>
import functools

import jax
import jax.numpy as jnp
from jax.experimental import pallas as pl
from jax.experimental.pallas import tpu as pltpu

LANE = 128


def _round_up(x, m):
    return ((x + m - 1) // m) * m


def _vmem_limit_bytes(frac=0.75):
    # Raise the scoped VMEM limit toward physical capacity, leaving headroom.
    try:
        cap = pltpu.get_tpu_info().vmem_capacity_bytes
    except Exception:
        cap = 64 * 1024 * 1024
    return int(cap * frac)


def wordavg_hist_kernel(tok_ref, p_ref, b_ref, o_ref):
    """Small-vocab path: per-token one-hot accumulation (VPU) + one MXU matmul.

    tok_ref: (TB, S) int32   p_ref: (Vp, Op) bf16/f32 (VMEM-pinned, pre-scaled)
    b_ref:   (1, Op) f32     o_ref: (TB, Op) f32
    """
    tb, s = tok_ref.shape
    vp = p_ref.shape[0]

    # (TB, Vp) vocab iota, hoisted out of the S loop (review item 2).
    vocab_iota = jax.lax.broadcasted_iota(jnp.int32, (tb, vp), dimension=1)

    tok = tok_ref[...]                               # (TB, S) int32
    counts = jnp.zeros((tb, vp), jnp.float32)        # live data bounded to (TB, Vp)

    if s <= 32:
        # Short sequences: fully unrolled static loop (static lane slices).
        for t in range(s):
            counts = counts + (tok[:, t:t + 1] == vocab_iota).astype(jnp.float32)
    else:
        # Long sequences: rolled loop, dynamic lane slice of the token ref.
        def body(t, c):
            col = tok_ref[:, pl.ds(t, 1)]            # (TB, 1)
            return c + (col == vocab_iota).astype(jnp.float32)
        counts = jax.lax.fori_loop(0, s, body, counts)

    # Gather + mean + Linear collapse into one lane-dense MXU matmul against
    # the pre-projected, pre-scaled table.  counts are exact in bf16 (<= S).
    acc = jnp.dot(counts.astype(p_ref.dtype), p_ref[...],
                  preferred_element_type=jnp.float32)          # (TB, Op)
    o_ref[...] = acc + b_ref[...]


def wordavg_gather_kernel(tok_ref, p_ref, b_ref, o_ref, *, seq_len):
    """Large-vocab path: SMEM scalar-prefetched token ids drive dynamic row
    gathers of the pinned projected table (O(TB*S) row loads, no O(V) work).

    tok_ref: (Bp*S,) int32 in SMEM (whole array, scalar-prefetched)
    p_ref:   (Vp, Op) bf16/f32 (VMEM-pinned, pre-scaled by 1/S)
    b_ref:   (1, Op) f32     o_ref: (TB, Op) f32
    """
    tb, op = o_ref.shape
    bias = b_ref[...]                                          # (1, Op)
    base = pl.program_id(0) * tb * seq_len

    @pl.loop(0, tb)
    def _(b):
        row_start = base + b * seq_len

        def add_token(t, acc):
            token = tok_ref[row_start + t]                     # scalar SMEM read
            row = p_ref[pl.ds(token, 1), :]                    # (1, Op) dynamic row
            return acc + row.astype(jnp.float32)

        pooled = jax.lax.fori_loop(
            0, seq_len, add_token, jnp.zeros((1, op), jnp.float32),
            unroll=seq_len <= 16)
        o_ref[pl.ds(b, 1), :] = pooled + bias


def wordavg_forward(tokens, emb_table, fc_weight, fc_bias, *,
                    tb=256, mode="auto", table_dtype=jnp.bfloat16,
                    single_buffer_table=False):
    """tokens: (B, S) int32; emb_table: (V, E); fc_weight: (O, E); fc_bias: (O,)."""
    B, S = tokens.shape
    V, _E = emb_table.shape
    O = fc_weight.shape[0]

    Vp = _round_up(V, LANE)
    Op = _round_up(O, LANE)

    # Effective batch tile: as large as requested (default 256, review item 1),
    # but shrunk for small B so the "parallel" batch grid still has >= 2 steps
    # (v7x megacore sharding / pipelining, review item 7); multiple of 8.
    tb_req = _round_up(max(int(tb), 8), 8)
    tb_eff = min(tb_req, max(8, _round_up(pl.cdiv(B, 2), 8)))
    Bp = max(_round_up(B, tb_eff), 2 * tb_eff)
    grid = (Bp // tb_eff,)

    if mode == "auto":
        # Histogram only when the padded vocab is within a small multiple of S;
        # otherwise the gather path (review item 3).
        mode = "histogram" if Vp <= 16 * S else "gather"

    # One-time fold: P = (emb @ W.T) * (1/S).  padding_idx row of emb is zero,
    # so its projected row is zero too.  bf16 storage feeds the MXU natively
    # and halves the pinned-table VMEM footprint (review items 4, 8).
    proj = jnp.dot(emb_table.astype(jnp.float32),
                   fc_weight.T.astype(jnp.float32)) * (1.0 / S)
    proj_pad = jnp.zeros((Vp, Op), table_dtype).at[:V, :O].set(
        proj.astype(table_dtype))
    bias_pad = jnp.zeros((1, Op), jnp.float32).at[0, :O].set(
        fc_bias.astype(jnp.float32))

    # Constant-index (pinned) table/bias.  On v7x (64 MiB VMEM) with large V,
    # pass single_buffer_table=True to single-buffer them (review item 5).
    pin_kw = dict(pipeline_mode=pl.Buffered(1)) if single_buffer_table else {}

    compiler_params = pltpu.CompilerParams(
        dimension_semantics=("parallel",),
        vmem_limit_bytes=_vmem_limit_bytes(),
    )

    if mode == "histogram":
        tok_pad = jnp.zeros((Bp, S), jnp.int32).at[:B, :].set(
            tokens.astype(jnp.int32))
        out = pl.pallas_call(
            wordavg_hist_kernel,
            out_shape=jax.ShapeDtypeStruct((Bp, Op), jnp.float32),
            grid_spec=pltpu.PrefetchScalarGridSpec(
                num_scalar_prefetch=0,
                grid=grid,
                in_specs=[
                    # Streamed per batch tile: only the int32 token ids.
                    pl.BlockSpec((tb_eff, S), lambda i: (i, 0)),
                    # Projected table + bias: constant index_map -> VMEM-pinned.
                    pl.BlockSpec((Vp, Op), lambda i: (0, 0), **pin_kw),
                    pl.BlockSpec((1, Op), lambda i: (0, 0), **pin_kw),
                ],
                out_specs=pl.BlockSpec((tb_eff, Op), lambda i: (i, 0)),
            ),
            compiler_params=compiler_params,
        )(tok_pad, proj_pad, bias_pad)
    else:
        # Gather path: token ids flattened to 1D (cheap SMEM padding) and
        # scalar-prefetched; no streamed token BlockSpec at all.
        tok_flat = jnp.zeros((Bp * S,), jnp.int32).at[:B * S].set(
            tokens.astype(jnp.int32).reshape(-1))
        kernel = functools.partial(wordavg_gather_kernel, seq_len=S)
        out = pl.pallas_call(
            kernel,
            out_shape=jax.ShapeDtypeStruct((Bp, Op), jnp.float32),
            grid_spec=pltpu.PrefetchScalarGridSpec(
                num_scalar_prefetch=1,       # token ids land in SMEM
                grid=grid,
                in_specs=[
                    pl.BlockSpec((Vp, Op), lambda i, tok: (0, 0), **pin_kw),
                    pl.BlockSpec((1, Op), lambda i, tok: (0, 0), **pin_kw),
                ],
                out_specs=pl.BlockSpec((tb_eff, Op), lambda i, tok: (i, 0)),
            ),
            compiler_params=compiler_params,
        )(tok_flat, proj_pad, bias_pad)

    return out[:B, :O]


if __name__ == "__main__":
    # Small, forward-consistent shapes.
    VOCAB, EMB_DIM, OUT_DIM, PAD_IDX = 50, 32, 8, 0
    BATCH, SEQ = 4, 8

    key = jax.random.PRNGKey(0)
    k_emb, k_w, k_b, k_tok = jax.random.split(key, 4)

    # Deterministic synthetic params (mirror nn.Embedding / nn.Linear shapes).
    emb_table = jax.random.normal(k_emb, (VOCAB, EMB_DIM), dtype=jnp.float32)
    emb_table = emb_table.at[PAD_IDX].set(0.0)            # padding_idx row zeroed
    fc_weight = jax.random.normal(k_w, (OUT_DIM, EMB_DIM), dtype=jnp.float32) * 0.1
    fc_bias = jax.random.normal(k_b, (OUT_DIM,), dtype=jnp.float32) * 0.1
    tokens = jax.random.randint(k_tok, (BATCH, SEQ), 0, VOCAB, dtype=jnp.int32)

    def reference(tok, table):
        return jnp.mean(jnp.take(table, tok, axis=0), axis=1) @ fc_weight.T + fc_bias

    # Path 1: small vocab -> histogram + MXU path (auto-selected).
    out_hist = jax.block_until_ready(
        wordavg_forward(tokens, emb_table, fc_weight, fc_bias))
    ref_hist = reference(tokens, emb_table)
    assert out_hist.shape == (BATCH, OUT_DIM)
    assert jnp.allclose(out_hist, ref_hist, atol=1e-2, rtol=1e-2), \
        float(jnp.max(jnp.abs(out_hist - ref_hist)))

    # Path 2: larger vocab -> scalar-prefetch SMEM gather path (auto-selected).
    VOCAB2 = 2000
    emb_table2 = jax.random.normal(jax.random.PRNGKey(1), (VOCAB2, EMB_DIM),
                                   dtype=jnp.float32)
    emb_table2 = emb_table2.at[PAD_IDX].set(0.0)
    tokens2 = jax.random.randint(jax.random.PRNGKey(2), (BATCH, SEQ), 0, VOCAB2,
                                 dtype=jnp.int32)
    out_gather = jax.block_until_ready(
        wordavg_forward(tokens2, emb_table2, fc_weight, fc_bias))
    ref_gather = reference(tokens2, emb_table2)
    assert out_gather.shape == (BATCH, OUT_DIM)
    assert jnp.allclose(out_gather, ref_gather, atol=1e-2, rtol=1e-2), \
        float(jnp.max(jnp.abs(out_gather - ref_gather)))

    print("KERNEL_OK")
</pallas_src>

<mosaic_0001>
module attributes {stable_mosaic.version = 11 : i64} {
  func.func @wordavg_hist_kernel(%arg0: i32, %arg1: memref<8x8xi32, #tpu.memory_space<vmem>>, %arg2: memref<128x128xbf16, #tpu.memory_space<vmem>>, %arg3: memref<1x128xf32, #tpu.memory_space<vmem>>, %arg4: memref<8x128xf32, #tpu.memory_space<vmem>>) attributes {dimension_semantics = [#tpu.dimension_semantics<parallel>], iteration_bounds = array<i64: 2>, scalar_prefetch = 0 : i64, scratch_operands = 0 : i64, tpu.core_type = #tpu.core_type<tc>, window_params = [{transform_indices = @transform_0, window_bounds = array<i64: 8, 8>}, {pipeline_mode = #tpu.pipeline_mode<synchronous>, transform_indices = @transform_1, window_bounds = array<i64: 128, 128>}, {pipeline_mode = #tpu.pipeline_mode<synchronous>, transform_indices = @transform_2, window_bounds = array<i64: 1, 128>}, {transform_indices = @transform_3, window_bounds = array<i64: 8, 128>}]} {
    %0 = tpu.iota {dimensions = array<i32: 1>} : vector<8x128xi32>
    %c0 = arith.constant 0 : index
    %c0_0 = arith.constant 0 : index
    %1 = vector.load %arg1[%c0, %c0_0] : memref<8x8xi32, #tpu.memory_space<vmem>>, vector<8x8xi32>
    %cst = arith.constant 0.000000e+00 : f32
    %2 = vector.broadcast %cst : f32 to vector<8x128xf32>
    %3 = vector.extract_strided_slice %1 {offsets = [0, 0], sizes = [8, 1], strides = [1, 1]} : vector<8x8xi32> to vector<8x1xi32>
    %4 = vector.broadcast %3 : vector<8x1xi32> to vector<8x128xi32>
    %5 = arith.cmpi eq, %4, %0 : vector<8x128xi32>
    %6 = arith.extui %5 : vector<8x128xi1> to vector<8x128xi32>
    %7 = arith.sitofp %6 : vector<8x128xi32> to vector<8x128xf32>
    %8 = arith.addf %2, %7 : vector<8x128xf32>
    %9 = vector.extract_strided_slice %1 {offsets = [0, 1], sizes = [8, 1], strides = [1, 1]} : vector<8x8xi32> to vector<8x1xi32>
    %10 = vector.broadcast %9 : vector<8x1xi32> to vector<8x128xi32>
    %11 = arith.cmpi eq, %10, %0 : vector<8x128xi32>
    %12 = arith.extui %11 : vector<8x128xi1> to vector<8x128xi32>
    %13 = arith.sitofp %12 : vector<8x128xi32> to vector<8x128xf32>
    %14 = arith.addf %8, %13 : vector<8x128xf32>
    %15 = vector.extract_strided_slice %1 {offsets = [0, 2], sizes = [8, 1], strides = [1, 1]} : vector<8x8xi32> to vector<8x1xi32>
    %16 = vector.broadcast %15 : vector<8x1xi32> to vector<8x128xi32>
    %17 = arith.cmpi eq, %16, %0 : vector<8x128xi32>
    %18 = arith.extui %17 : vector<8x128xi1> to vector<8x128xi32>
    %19 = arith.sitofp %18 : vector<8x128xi32> to vector<8x128xf32>
    %20 = arith.addf %14, %19 : vector<8x128xf32>
    %21 = vector.extract_strided_slice %1 {offsets = [0, 3], sizes = [8, 1], strides = [1, 1]} : vector<8x8xi32> to vector<8x1xi32>
    %22 = vector.broadcast %21 : vector<8x1xi32> to vector<8x128xi32>
    %23 = arith.cmpi eq, %22, %0 : vector<8x128xi32>
    %24 = arith.extui %23 : vector<8x128xi1> to vector<8x128xi32>
    %25 = arith.sitofp %24 : vector<8x128xi32> to vector<8x128xf32>
    %26 = arith.addf %20, %25 : vector<8x128xf32>
    %27 = vector.extract_strided_slice %1 {offsets = [0, 4], sizes = [8, 1], strides = [1, 1]} : vector<8x8xi32> to vector<8x1xi32>
    %28 = vector.broadcast %27 : vector<8x1xi32> to vector<8x128xi32>
    %29 = arith.cmpi eq, %28, %0 : vector<8x128xi32>
    %30 = arith.extui %29 : vector<8x128xi1> to vector<8x128xi32>
    %31 = arith.sitofp %30 : vector<8x128xi32> to vector<8x128xf32>
    %32 = arith.addf %26, %31 : vector<8x128xf32>
    %33 = vector.extract_strided_slice %1 {offsets = [0, 5], sizes = [8, 1], strides = [1, 1]} : vector<8x8xi32> to vector<8x1xi32>
    %34 = vector.broadcast %33 : vector<8x1xi32> to vector<8x128xi32>
    %35 = arith.cmpi eq, %34, %0 : vector<8x128xi32>
    %36 = arith.extui %35 : vector<8x128xi1> to vector<8x128xi32>
    %37 = arith.sitofp %36 : vector<8x128xi32> to vector<8x128xf32>
    %38 = arith.addf %32, %37 : vector<8x128xf32>
    %39 = vector.extract_strided_slice %1 {offsets = [0, 6], sizes = [8, 1], strides = [1, 1]} : vector<8x8xi32> to vector<8x1xi32>
    %40 = vector.broadcast %39 : vector<8x1xi32> to vector<8x128xi32>
    %41 = arith.cmpi eq, %40, %0 : vector<8x128xi32>
    %42 = arith.extui %41 : vector<8x128xi1> to vector<8x128xi32>
    %43 = arith.sitofp %42 : vector<8x128xi32> to vector<8x128xf32>
    %44 = arith.addf %38, %43 : vector<8x128xf32>
    %45 = vector.extract_strided_slice %1 {offsets = [0, 7], sizes = [8, 1], strides = [1, 1]} : vector<8x8xi32> to vector<8x1xi32>
    %46 = vector.broadcast %45 : vector<8x1xi32> to vector<8x128xi32>
    %47 = arith.cmpi eq, %46, %0 : vector<8x128xi32>
    %48 = arith.extui %47 : vector<8x128xi1> to vector<8x128xi32>
    %49 = arith.sitofp %48 : vector<8x128xi32> to vector<8x128xf32>
    %50 = arith.addf %44, %49 : vector<8x128xf32>
    %51 = arith.truncf %50 : vector<8x128xf32> to vector<8x128xbf16>
    %c0_1 = arith.constant 0 : index
    %c0_2 = arith.constant 0 : index
    %52 = vector.load %arg2[%c0_1, %c0_2] : memref<128x128xbf16, #tpu.memory_space<vmem>>, vector<128x128xbf16>
    %cst_3 = arith.constant dense<0.000000e+00> : vector<8x128xf32>
    %53 = tpu.matmul %51, %52, %cst_3 {dimension_numbers = #tpu.dot_dimension_numbers<[1], [0], [0], [1], [0, 0, 1, 1], [], []>} : vector<8x128xbf16>, vector<128x128xbf16>, vector<8x128xf32> -> vector<8x128xf32>
    %c0_4 = arith.constant 0 : index
    %c0_5 = arith.constant 0 : index
    %54 = vector.load %arg3[%c0_4, %c0_5] : memref<1x128xf32, #tpu.memory_space<vmem>>, vector<1x128xf32>
    %55 = vector.broadcast %54 : vector<1x128xf32> to vector<8x128xf32>
    %56 = arith.addf %53, %55 : vector<8x128xf32>
    %c0_6 = arith.constant 0 : index
    %c0_7 = arith.constant 0 : index
    %57 = vector.load %arg4[%c0_6, %c0_7] : memref<8x128xf32, #tpu.memory_space<vmem>>, vector<8x128xf32>
    tpu.vector_store %arg4[%c0_6, %c0_7], %56 {strides = array<i32>} : memref<8x128xf32, #tpu.memory_space<vmem>>, vector<8x128xf32>,
    return
  }
  func.func @transform_0(%arg0: i32) -> (i32, i32) {
    %c0_i32 = arith.constant 0 : i32
    %c0_i32_0 = arith.constant 0 : i32
    return %arg0, %c0_i32 : i32, i32
  }
  func.func @transform_1(%arg0: i32) -> (i32, i32) {
    %c0_i32 = arith.constant 0 : i32
    %c0_i32_0 = arith.constant 0 : i32
    %c0_i32_1 = arith.constant 0 : i32
    return %c0_i32, %c0_i32_0 : i32, i32
  }
  func.func @transform_2(%arg0: i32) -> (i32, i32) {
    %c0_i32 = arith.constant 0 : i32
    %c0_i32_0 = arith.constant 0 : i32
    %c0_i32_1 = arith.constant 0 : i32
    return %c0_i32, %c0_i32_0 : i32, i32
  }
  func.func @transform_3(%arg0: i32) -> (i32, i32) {
    %c0_i32 = arith.constant 0 : i32
    %c0_i32_0 = arith.constant 0 : i32
    return %arg0, %c0_i32 : i32, i32
  }
}

</mosaic_0001>

<llo_original>
// kernel: tpu_custom_call.1
$region0: #{tpu_custom_call.1}
  #allocation0 [shape = 'u32[]', space=smem, size = 0x4, offset = 0x4, fixed_abs, tag = 'smem constant byte address 0x4 - core index']
  #allocation1 [shape = 'u32[72,128]{1,0:T(1,128)}', space=vmem, size = 0x9000, scoped, tag = 'internal scratch']
  %s0 = inlined_call_operand.vmem [shape: s32[16,8], index: 0, kind: input, shape index: {}]
  %s1 = inlined_call_operand.hbm [shape: bf16[128,128], index: 1, kind: input, shape index: {}]
  %s2 = inlined_call_operand.vmem [shape: f32[1,128], index: 2, kind: input, shape index: {}]
  %s3 = inlined_call_operand.hbm [shape: f32[16,128], index: 3, kind: output, shape index: {}]
  %s4 = sld [smem:[#allocation0]]
  $region49: #{tpu_custom_call.1} parent=0
    _
  %s6 = ssub.s32 1, %s4
  %s7 = scalar_select 0, %s6, %s4
  $region1: #{tpu_custom_call.1} parent=0
    #allocation2 [shape = 'u8[32768]{0}', space=vmem, size = 0x8000, scoped, tag = 'input window, operand 1, single buffered']
    #allocation3 [shape = 's32[2]{0}', space=sflag, size = 0x8, scoped, tag = 'scoped memory for tpu_custom_call.1']
    #allocation4 [shape = 's32[2]{0}', space=sflag, size = 0x8, scoped, tag = 'scoped memory for tpu_custom_call.1']
    #allocation5 [shape = 'u8[8192]{0}', space=vmem, size = 0x2000, scoped, tag = 'output window, operand 0']
    %8 = vsyncpa [#allocation3], 0
    %9 = vsyncpa [#allocation4], 0
    %s10 = scalar_lea.sflag [#allocation4], 1
    %11 = vsyncpa %s10, 0
    loop: start=0, step=1, limit=4
    $region2: #{tpu_custom_call.1} parent=1 // loop_pre_header
      _
    $region3: #{tpu_custom_call.1} parent=1 // loop_header
      %s13 = sphi 0, %s17
      %p14 = scmp.ge.s32.totalorder %s13, 4
      %s23 = sphi 0, %s25
      %s26 = sphi 0, %s23
      %s27 = sphi 0, %s26
      %s43 = sphi 0, %s27
      %s47 = sphi 0, %s47
      %s49 = sphi 0, %s47
      %s50 = sphi 0, %s49
      %s64 = sphi 0, %s50
      %s68 = sphi 0, %s68
      %s70 = sphi 0, %s68
      %s71 = sphi 0, %s70
      %s85 = sphi 0, %s71
      %s91 = sphi 0, %s93
      %s94 = sphi 0, %s91
      %s95 = sphi 0, %s94
      %s111 = sphi 0, %s95
    $region4: #{tpu_custom_call.1} parent=1 // loop_header_branch
      %16 = sbr.rel (%p14) target = $region8
    $region5: #{tpu_custom_call.1} parent=1 // loop_body
      %s18 = ssub.s32 %s13, 1
      %s19 = ssub.s32 %s13, 2
      %s20 = sadd.s32 %s13, 1
      %s21 = ssub.s32 %s13, %s20
      %p22 = scmp.eq.s32.totalorder %s21, 0
      %s24 = sadd.s32 %s23, 1
      %s25 = scalar_select %p22, %s23, %s24
      %p28 = pneg %p22
      %p29 = scmp.eq.s32.totalorder %s13, 1
      %p30 = por %p28, %p29
      %p31 = scmp.ne.s32.totalorder %s23, %s26
      %p32 = scmp.eq.s32.totalorder %s13, 0
      %p33 = por %p31, %p32
      %p34 = scmp.ne.s32.totalorder %s23, %s26
      %p35 = scmp.eq.s32.totalorder %s18, 1
      %p36 = por %p34, %p35
      %p37 = scmp.ne.s32.totalorder %s26, %s27
      %p38 = scmp.eq.s32.totalorder %s18, 0
      %p39 = por %p37, %p38
      %p40 = scmp.ne.s32.totalorder %s26, %s27
      %p41 = scmp.eq.s32.totalorder %s19, 1
      %p42 = por %p40, %p41
      %p44 = scmp.ne.s32.totalorder %s27, %s43
      %p45 = scmp.eq.s32.totalorder %s19, 0
      %p46 = por %p44, %p45
      %s48 = sadd.s32 %s47, 1
      %p51 = scmp.eq.s32.totalorder %s13, 1
      %p52 = scmp.ne.s32.totalorder %s47, %s49
      %p53 = scmp.eq.s32.totalorder %s13, 0
      %p54 = por %p52, %p53
      %p55 = scmp.ne.s32.totalorder %s47, %s49
      %p56 = scmp.eq.s32.totalorder %s18, 1
      %p57 = por %p55, %p56
      %p58 = scmp.ne.s32.totalorder %s49, %s50
      %p59 = scmp.eq.s32.totalorder %s18, 0
      %p60 = por %p58, %p59
      %p61 = scmp.ne.s32.totalorder %s49, %s50
      %p62 = scmp.eq.s32.totalorder %s19, 1
      %p63 = por %p61, %p62
      %p65 = scmp.ne.s32.totalorder %s50, %s64
      %p66 = scmp.eq.s32.totalorder %s19, 0
      %p67 = por %p65, %p66
      %s69 = sadd.s32 %s68, 1
      %p72 = scmp.eq.s32.totalorder %s13, 1
      %p73 = scmp.ne.s32.totalorder %s68, %s70
      %p74 = scmp.eq.s32.totalorder %s13, 0
      %p75 = por %p73, %p74
      %p76 = scmp.ne.s32.totalorder %s68, %s70
      %p77 = scmp.eq.s32.totalorder %s18, 1
      %p78 = por %p76, %p77
      %p79 = scmp.ne.s32.totalorder %s70, %s71
      %p80 = scmp.eq.s32.totalorder %s18, 0
      %p81 = por %p79, %p80
      %p82 = scmp.ne.s32.totalorder %s70, %s71
      %p83 = scmp.eq.s32.totalorder %s19, 1
      %p84 = por %p82, %p83
      %p86 = scmp.ne.s32.totalorder %s71, %s85
      %p87 = scmp.eq.s32.totalorder %s19, 0
      %p88 = por %p86, %p87
      %s89 = ssub.s32 %s13, %s20
      %p90 = scmp.eq.s32.totalorder %s89, 0
      %s92 = sadd.s32 %s91, 1
      %s93 = scalar_select %p90, %s91, %s92
      %p96 = pneg %p90
      %p97 = scmp.eq.s32.totalorder %s13, 1
      %p98 = por %p96, %p97
      %p99 = scmp.ne.s32.totalorder %s91, %s94
      %p100 = scmp.eq.s32.totalorder %s13, 0
      %p101 = por %p99, %p100
      %p102 = scmp.ne.s32.totalorder %s91, %s94
      %p103 = scmp.eq.s32.totalorder %s18, 1
      %p104 = por %p102, %p103
      %p105 = scmp.ne.s32.totalorder %s94, %s95
      %p106 = scmp.eq.s32.totalorder %s18, 0
      %p107 = por %p105, %p106
      %p108 = scmp.ne.s32.totalorder %s94, %s95
      %p109 = scmp.eq.s32.totalorder %s19, 1
      %p110 = por %p108, %p109
      %p112 = scmp.ne.s32.totalorder %s95, %s111
      %p113 = scmp.eq.s32.totalorder %s19, 0
      %p114 = por %p112, %p113
      %p115 = scmp.le.s32.totalorder 1, %s13
      %p116 = scmp.lt.s32.totalorder %s13, 3
      %p117 = pnand %p115, %p116
      %p118 = pneg %p117
      // Predicated region
      $region9: #{tpu_custom_call.1} parent=5 // pred_check
        _
      $region10: #{tpu_custom_call.1} parent=5 // pred_check_branch
        %120 = sbr.rel (%p117) target = $region12
      $region11: #{tpu_custom_call.1} parent=5 // pred_region
        %s121 = ssub.s32 %s13, 1
        // Predicated region
        $region13: #{tpu_custom_call.1} parent=11 // pred_check
          %p122 = pneg %p60
        $region14: #{tpu_custom_call.1} parent=11 // pred_check_branch
          %124 = sbr.rel (%p122) target = $region16
        $region15: #{tpu_custom_call.1} parent=11 // pred_region
          %126 = vsyncadd [#allocation3], 0
          %s127 = sshll.u32 %s1, 4
          %s128 = int_to_ptr.hbm [resolvable:$true] %s127
          %s129 = sshll.u32 [#allocation2], 4
          %s130 = int_to_ptr.vmem [resolvable:$true] %s129
          %135 = dma.hbm_to_vmem [thread:$0]  %s128, 1024, %s130, [#allocation3], 64, 64, 4
        $region16: #{tpu_custom_call.1} parent=11 // pred_fallthru
          _
        // Predicated region
        $region17: #{tpu_custom_call.1} parent=11 // pred_check
          %p136 = pneg %p81
        $region18: #{tpu_custom_call.1} parent=11 // pred_check_branch
          %138 = sbr.rel (%p136) target = $region20
        $region19: #{tpu_custom_call.1} parent=11 // pred_region
          _
        $region20: #{tpu_custom_call.1} parent=11 // pred_fallthru
          _
      $region12: #{tpu_custom_call.1} parent=5 // pred_fallthru
        _
      %p139 = scmp.lt.s32.totalorder %s13, 2
      // Predicated region
      $region21: #{tpu_custom_call.1} parent=5 // pred_check
        %p140 = pneg %p139
      $region22: #{tpu_custom_call.1} parent=5 // pred_check_branch
        %142 = sbr.rel (%p140) target = $region24
      $region23: #{tpu_custom_call.1} parent=5 // pred_region
        // Predicated region
        $region25: #{tpu_custom_call.1} parent=23 // pred_check
          %p143 = pneg %p33
        $region26: #{tpu_custom_call.1} parent=23 // pred_check_branch
          %145 = sbr.rel (%p143) target = $region28
        $region27: #{tpu_custom_call.1} parent=23 // pred_region
          %p146 = scmp.lt.s32.totalorder %s13, 1
          %s147 = scalar_select %p146, %s13, 1
          %s148 = smul.addr %s147, 8
          %s149 = scalar_lea.vmem %s0, %s148
        $region28: #{tpu_custom_call.1} parent=23 // pred_fallthru
          _
      $region24: #{tpu_custom_call.1} parent=5 // pred_fallthru
        _
      %p150 = scmp.le.s32.totalorder 1, %s13
      %p151 = scmp.lt.s32.totalorder %s13, 3
      %p152 = pnand %p150, %p151
      %p153 = pneg %p152
      // Predicated region
      $region29: #{tpu_custom_call.1} parent=5 // pred_check
        _
      $region30: #{tpu_custom_call.1} parent=5 // pred_check_branch
        %155 = sbr.rel (%p152) target = $region32
      $region31: #{tpu_custom_call.1} parent=5 // pred_region
        %s156 = ssub.s32 %s13, 1
        // Predicated region
        $region33: #{tpu_custom_call.1} parent=31 // pred_check
          %p157 = pneg %p60
        $region34: #{tpu_custom_call.1} parent=31 // pred_check_branch
          %159 = sbr.rel (%p157) target = $region36
        $region35: #{tpu_custom_call.1} parent=31 // pred_region
          %161 = dma.done [#allocation3], 1024
        $region36: #{tpu_custom_call.1} parent=31 // pred_fallthru
          _
        %p162 = scmp.lt.s32.totalorder %s18, 1
        %s163 = scalar_select %p162, %s18, 1
        %s164 = smul.addr %s163, 8
        %s165 = scalar_lea.vmem %s0, %s164
        %p166 = pneg %p39
        %p167 = pneg %p36
        %p168 = pneg %p60
        %p169 = pneg %p57
        %p170 = pneg %p81
        %p171 = pneg %p78
        %p172 = pneg %p107
        %p173 = pneg %p104
        %s174 = sand.u32 %s94, 1
        %s175 = scalar_lea.sflag [#allocation4], %s174
        %s176 = sand.u32 %s94, 1
        %s177 = smul.addr %s176, 8
        %s178 = scalar_lea.vmem [#allocation5], %s177
        %p179 = scmp.lt.s32.totalorder %s18, 1
        %s180 = scalar_select %p179, %s18, 1
        %s181 = smul.addr %s180, 8
        %s182 = scalar_lea.vmem %s0, %s181
        %v183 = vlaneseq
        %v184 = vand.u32 %v183, 127
        %v185 = vld [vmem:[%s182] sm:$0xff]
        %186 = vset.pattern.permute.xlu0 0
        %187 = vperm.xlu0 %186, %v185
        %v188 = vpop.permute.xlu0 %187
        %vm189 = vcmp.eq.s32.totalorder %v188, %v184
        %v190 = vsel %vm189, 1, 0
        %v191 = vcvt.s32.f32 %v190
        %v192 = vadd.f32 %v191, 0.0
        %193 = vset.pattern.permute.xlu0 1
        %194 = vperm.xlu0 %193, %v185
        %v195 = vpop.permute.xlu0 %194
        %vm196 = vcmp.eq.s32.totalorder %v195, %v184
        %v197 = vsel %vm196, 1, 0
        %v198 = vcvt.s32.f32 %v197
        %v199 = vadd.f32 %v192, %v198
        %200 = vset.pattern.permute.xlu0 2
        %201 = vperm.xlu0 %200, %v185
        %v202 = vpop.permute.xlu0 %201
        %vm203 = vcmp.eq.s32.totalorder %v202, %v184
        %v204 = vsel %vm203, 1, 0
        %v205 = vcvt.s32.f32 %v204
        %v206 = vadd.f32 %v199, %v205
        %207 = vset.pattern.permute.xlu0 3
        %208 = vperm.xlu0 %207, %v185
        %v209 = vpop.permute.xlu0 %208
        %vm210 = vcmp.eq.s32.totalorder %v209, %v184
        %v211 = vsel %vm210, 1, 0
        %v212 = vcvt.s32.f32 %v211
        %v213 = vadd.f32 %v206, %v212
        %214 = vset.pattern.permute.xlu0 4
        %215 = vperm.xlu0 %214, %v185
        %v216 = vpop.permute.xlu0 %215
        %vm217 = vcmp.eq.s32.totalorder %v216, %v184
        %v218 = vsel %vm217, 1, 0
        %v219 = vcvt.s32.f32 %v218
        %v220 = vadd.f32 %v213, %v219
        %221 = vset.pattern.permute.xlu0 5
        %222 = vperm.xlu0 %221, %v185
        %v223 = vpop.permute.xlu0 %222
        %vm224 = vcmp.eq.s32.totalorder %v223, %v184
        %v225 = vsel %vm224, 1, 0
        %v226 = vcvt.s32.f32 %v225
        %v227 = vadd.f32 %v220, %v226
        %228 = vset.pattern.permute.xlu0 6
        %229 = vperm.xlu0 %228, %v185
        %v230 = vpop.permute.xlu0 %229
        %vm231 = vcmp.eq.s32.totalorder %v230, %v184
        %v232 = vsel %vm231, 1, 0
        %v233 = vcvt.s32.f32 %v232
        %v234 = vadd.f32 %v227, %v233
        %235 = vset.pattern.permute.xlu0 7
        %236 = vperm.xlu0 %235, %v185
        %v237 = vpop.permute.xlu0 %236
        %vm238 = vcmp.eq.s32.totalorder %v237, %v184
        %v239 = vsel %vm238, 1, 0
        %v240 = vcvt.s32.f32 %v239
        %v241 = vadd.f32 %v234, %v240
        %v242 = vpack.c.bf16 %v241, %v241
        %v243 = vld [vmem:[#allocation2] sm:$0xf]
        %v244 = vld [vmem:[#allocation2 + $0x4] sm:$0xf]
        %v245 = vld [vmem:[#allocation2 + $0x8] sm:$0xf]
        %v246 = vld [vmem:[#allocation2 + $0xc] sm:$0xf]
        %v247 = vld [vmem:[#allocation2 + $0x10] sm:$0xf]
        %v248 = vld [vmem:[#allocation2 + $0x14] sm:$0xf]
        %v249 = vld [vmem:[#allocation2 + $0x18] sm:$0xf]
        %v250 = vld [vmem:[#allocation2 + $0x1c] sm:$0xf]
        %v251 = vld [vmem:[#allocation2 + $0x20] sm:$0xf]
        %v252 = vld [vmem:[#allocation2 + $0x24] sm:$0xf]
        %v253 = vld [vmem:[#allocation2 + $0x28] sm:$0xf]
        %v254 = vld [vmem:[#allocation2 + $0x2c] sm:$0xf]
        %v255 = vld [vmem:[#allocation2 + $0x30] sm:$0xf]
        %v256 = vld [vmem:[#allocation2 + $0x34] sm:$0xf]
        %v257 = vld [vmem:[#allocation2 + $0x38] sm:$0xf]
        %v258 = vld [vmem:[#allocation2 + $0x3c] sm:$0xf]
        %v259 = vld [vmem:[%s2] sm:$0x1]
        %v261 = vperm.slane %v259, 0
        %v279 = vunpack.c.l.b16 %v243
        %v280 = vunpack.c.l.b16 %v244
        %v281 = vunpack.c.l.b16 %v245
        %v282 = vunpack.c.l.b16 %v246
        %v283 = vunpack.c.l.b16 %v247
        %v284 = vunpack.c.l.b16 %v248
        %v285 = vunpack.c.l.b16 %v249
        %v286 = vunpack.c.l.b16 %v250
        %v287 = vunpack.c.l.b16 %v251
        %v288 = vunpack.c.l.b16 %v252
        %v289 = vunpack.c.l.b16 %v253
        %v290 = vunpack.c.l.b16 %v254
        %v291 = vunpack.c.l.b16 %v255
        %v292 = vunpack.c.l.b16 %v256
        %v293 = vunpack.c.l.b16 %v257
        %v294 = vunpack.c.l.b16 %v258
        %v295 = vpack.c.b16 %v280, %v279
        %v296 = vpack.c.b16 %v282, %v281
        %v297 = vpack.c.b16 %v284, %v283
        %v298 = vpack.c.b16 %v286, %v285
        %v299 = vpack.c.b16 %v288, %v287
        %v300 = vpack.c.b16 %v290, %v289
        %v301 = vpack.c.b16 %v292, %v291
        %v302 = vpack.c.b16 %v294, %v293
        %311 = vmatpush.bf16.msra.mxu0 %v302
        %312 = vmatpush.bf16.msra.mxu0 %v301
        %313 = vmatpush.bf16.msra.mxu0 %v300
        %314 = vmatpush.bf16.msra.mxu0 %v299
        %315 = vmatpush.bf16.msra.mxu0 %v298
        %316 = vmatpush.bf16.msra.mxu0 %v297
        %317 = vmatpush.bf16.msra.mxu0 %v296
        %318 = vmatpush.bf16.msra.mxu0 %v295
        %319 = vmatmul.bf16.gmra.mxu0 %v242
        %v320 = vpop.f32.mrf.mxu0
        %v321 = vadd.f32 %v261, %v320
        %v322 = vpop.f32.mrf.mxu0
        %323 = vdwg.mxu0
        %324 = vst [vmem:[%s178] sm:$0xff] %v321
        %s325 = sand.u32 %s94, 1
        %s326 = scalar_lea.sflag [#allocation4], %s325
        %s327 = sand.u32 %s94, 1
        %s328 = smul.addr %s327, 8
        %s329 = scalar_lea.vmem [#allocation5], %s328
        // Predicated region
        $region37: #{tpu_custom_call.1} parent=31 // pred_check
          %p330 = pneg %p104
        $region38: #{tpu_custom_call.1} parent=31 // pred_check_branch
          %332 = sbr.rel (%p330) target = $region40
        $region39: #{tpu_custom_call.1} parent=31 // pred_region
          %334 = vsyncadd %s326, 0
          %s335 = smul.addr %s18, 8
          %s336 = scalar_lea.hbm %s3, %s335
          %s338 = sshll.u32 %s329, 4
          %s339 = int_to_ptr.vmem [resolvable:$true] %s338
          %s340 = sshll.u32 %s336, 4
          %s341 = int_to_ptr.hbm [resolvable:$true] %s340
          %343 = dma.vmem_to_hbm [thread:$0]  %s339, 128, %s341, %s326
        $region40: #{tpu_custom_call.1} parent=31 // pred_fallthru
          _
      $region32: #{tpu_custom_call.1} parent=5 // pred_fallthru
        _
      %p344 = scmp.le.s32.totalorder 2, %s13
      // Predicated region
      $region41: #{tpu_custom_call.1} parent=5 // pred_check
        %p345 = pneg %p344
      $region42: #{tpu_custom_call.1} parent=5 // pred_check_branch
        %347 = sbr.rel (%p345) target = $region44
      $region43: #{tpu_custom_call.1} parent=5 // pred_region
        %s348 = ssub.s32 %s13, 2
        // Predicated region
        $region45: #{tpu_custom_call.1} parent=43 // pred_check
          %p349 = pneg %p110
        $region46: #{tpu_custom_call.1} parent=43 // pred_check_branch
          %351 = sbr.rel (%p349) target = $region48
        $region47: #{tpu_custom_call.1} parent=43 // pred_region
          %s352 = sand.u32 %s95, 1
          %s353 = scalar_lea.sflag [#allocation4], %s352
          %s354 = sand.u32 %s95, 1
          %s355 = smul.addr %s354, 8
          %s356 = scalar_lea.vmem [#allocation5], %s355
          %358 = dma.done %s353, 128
        $region48: #{tpu_custom_call.1} parent=43 // pred_fallthru
          _
      $region44: #{tpu_custom_call.1} parent=5 // pred_fallthru
        _
    $region6: #{tpu_custom_call.1} parent=1 // loop_footer
      %s17 = sadd.s32 1, %s13
    $region7: #{tpu_custom_call.1} parent=1 // loop_footer_branch
      %12 = sbr.rel target = $region3
    $region8: #{tpu_custom_call.1} parent=1 // loop_exit
      _
    %359 = vsyncpa [#allocation3], 1
    %s360 = scalar_lea.sflag [#allocation3], 1
    %361 = vsyncpa %s360, 1
    %362 = vsyncpa [#allocation4], 1
    %s363 = scalar_lea.sflag [#allocation4], 1
    %364 = vsyncpa %s363, 1

</llo_original>
